<compile_context>
chip_gen: v7x
topology: tpu7x:2x2x1
jax: 0.10.0
libtpu: 0.0.40
codegen_flags: <defaults>
</compile_context>

<pallas_src>
import functools

import jax
import jax.numpy as jnp
from jax import lax
from jax.experimental import pallas as pl
from jax.experimental.pallas import tpu as pltpu

HEAD_PAD = 128  # fused mu||sigma head padded to one lane tile (lane-dense MXU matmul)


def _round_up(x, m):
    return ((x + m - 1) // m) * m


def _actor_kernel(x_ref, w1_ref, b1_ref, w2_ref, b2_ref, wh_ref, bh_ref,
                  mu_ref, sigma_ref, *, reparam_noise, n_actions):
    # fc1 + ReLU (f32 operands, f32 accumulation)
    h1 = jnp.maximum(
        jnp.dot(x_ref[...], w1_ref[...], preferred_element_type=jnp.float32)
        + b1_ref[...], 0.0)
    # fc2 + ReLU
    h2 = jnp.maximum(
        jnp.dot(h1, w2_ref[...], preferred_element_type=jnp.float32)
        + b2_ref[...], 0.0)
    # fused mu||sigma head: single 128-lane-dense matmul; only the real
    # columns are written back to HBM.
    head = (jnp.dot(h2, wh_ref[...], preferred_element_type=jnp.float32)
            + bh_ref[...])
    mu_ref[...] = head[:, :n_actions]
    sigma_ref[...] = jnp.clip(head[:, n_actions:2 * n_actions],
                              reparam_noise, 1.0)


def prepare_params(params, head_pad=HEAD_PAD):
    """One-time parameter prep — call once outside the hot loop.

    Fuses the mu / sigma heads into one lane-dense [fc2_dims, 128] matmul so the
    per-forward wrapper does no weight concat / pad work."""
    w1, b1, w2, b2, wmu, bmu, wsg, bsg = params
    n_actions = wmu.shape[1]
    assert 2 * n_actions <= head_pad
    wh = jnp.pad(jnp.concatenate([wmu, wsg], axis=1),
                 ((0, 0), (0, head_pad - 2 * n_actions)))
    bh = jnp.pad(jnp.concatenate([bmu, bsg], axis=1),
                 ((0, 0), (0, head_pad - 2 * n_actions)))
    return (w1, b1, w2, b2, wh, bh)


@functools.partial(
    jax.jit,
    static_argnames=("n_actions", "reparam_noise", "block_b", "num_cores_hint"))
def actor_forward(state, w1, b1, w2, b2, wh, bh, *, n_actions,
                  reparam_noise=1e-6, block_b=1024, num_cores_hint=2):
    """Pallas forward pass. state: [B, input_dim] float32 -> (mu, sigma)."""
    B, D = state.shape
    F1 = w1.shape[1]
    F2 = w2.shape[1]
    HP = wh.shape[1]

    # Balanced batch tiling: at least `num_cores_hint` tiles (v7x megacore),
    # at most ~block_b rows per tile, sublane (8) aligned.  No explicit pad:
    # Pallas handles the ragged last block (padded rows are discarded).
    g = max(num_cores_hint, pl.cdiv(B, block_b))
    TB = min(_round_up(pl.cdiv(B, g), 8), _round_up(block_b, 8))
    n_tiles = pl.cdiv(B, TB)

    const = lambda shape: pl.BlockSpec(shape, lambda i: (0,) * len(shape))
    kernel = functools.partial(_actor_kernel,
                               reparam_noise=reparam_noise,
                               n_actions=n_actions)

    mu, sigma = pl.pallas_call(
        kernel,
        out_shape=(jax.ShapeDtypeStruct((B, n_actions), jnp.float32),
                   jax.ShapeDtypeStruct((B, n_actions), jnp.float32)),
        grid=(n_tiles,),
        in_specs=[
            pl.BlockSpec((TB, D), lambda i: (i, 0)),      # state tile
            const((D, F1)), const((1, F1)),               # fc1 (VMEM-resident)
            const((F1, F2)), const((1, F2)),              # fc2 (VMEM-resident)
            const((F2, HP)), const((1, HP)),              # fused mu||sigma head
        ],
        out_specs=(pl.BlockSpec((TB, n_actions), lambda i: (i, 0)),
                   pl.BlockSpec((TB, n_actions), lambda i: (i, 0))),
        compiler_params=pltpu.CompilerParams(
            dimension_semantics=("parallel",)),
    )(state, w1, b1, w2, b2, wh, bh)
    return mu, sigma


def init_params(key, input_dim, fc1_dims=256, fc2_dims=256, n_actions=2):
    """PyTorch-style Linear init: U(-1/sqrt(fan_in), 1/sqrt(fan_in)).
    Weights stored as [in, out] (transposed vs torch's [out, in])."""
    ks = jax.random.split(key, 8)

    def linear(kw, kb, fan_in, fan_out):
        bound = 1.0 / jnp.sqrt(jnp.float32(fan_in))
        w = jax.random.uniform(kw, (fan_in, fan_out), jnp.float32, -bound, bound)
        b = jax.random.uniform(kb, (1, fan_out), jnp.float32, -bound, bound)
        return w, b

    w1, b1 = linear(ks[0], ks[1], input_dim, fc1_dims)
    w2, b2 = linear(ks[2], ks[3], fc1_dims, fc2_dims)
    wmu, bmu = linear(ks[4], ks[5], fc2_dims, n_actions)
    wsg, bsg = linear(ks[6], ks[7], fc2_dims, n_actions)
    return (w1, b1, w2, b2, wmu, bmu, wsg, bsg)


def reference_forward(state, params, reparam_noise=1e-6):
    """Pure-JAX f32 reference (HIGHEST precision matmuls)."""
    w1, b1, w2, b2, wmu, bmu, wsg, bsg = params
    dot = functools.partial(jnp.dot, precision=lax.Precision.HIGHEST)
    h1 = jnp.maximum(dot(state, w1) + b1, 0.0)
    h2 = jnp.maximum(dot(h1, w2) + b2, 0.0)
    mu = dot(h2, wmu) + bmu
    sigma = jnp.clip(dot(h2, wsg) + bsg, reparam_noise, 1.0)
    return mu, sigma


if __name__ == "__main__":
    key = jax.random.PRNGKey(0)
    k_param, k1, k2, k3 = jax.random.split(key, 4)

    input_dim = 8          # input_dims=(8,)
    n_actions = 2
    reparam_noise = 1e-6
    lo = float(jnp.float32(reparam_noise))  # f32 representation of the clamp min

    params = init_params(k_param, input_dim, 256, 256, n_actions)
    prep = jax.block_until_ready(prepare_params(params))  # one-time prep

    def run(state):
        mu, sigma = actor_forward(state, *prep, n_actions=n_actions,
                                  reparam_noise=reparam_noise)
        return jax.block_until_ready((mu, sigma))

    def check(state, mu, sigma, tag):
        mu_ref, sigma_ref = reference_forward(state, params, reparam_noise)
        assert mu.shape == (state.shape[0], n_actions), f"mu shape ({tag})"
        assert sigma.shape == (state.shape[0], n_actions), f"sigma shape ({tag})"
        # Tolerance covers possible MXU f32 pass-count differences vs the XLA
        # HIGHEST-precision reference while still catching structural bugs.
        assert jnp.allclose(mu, mu_ref, atol=1e-2, rtol=1e-2), f"mu mismatch ({tag})"
        assert jnp.allclose(sigma, sigma_ref, atol=1e-2, rtol=1e-2), f"sigma mismatch ({tag})"
        assert float(sigma.min()) >= lo and float(sigma.max()) <= 1.0, f"sigma bounds ({tag})"

    # Case 1: tiny batch (single tile).
    s1 = jax.random.normal(k1, (8, input_dim), jnp.float32)
    mu1, sg1 = run(s1)
    check(s1, mu1, sg1, "B=8")

    # Case 2: batch not a multiple of the tile -> 2 balanced tiles, ragged last block.
    s2 = jax.random.normal(k2, (600, input_dim), jnp.float32)
    mu2, sg2 = run(s2)
    check(s2, mu2, sg2, "B=600")

    # Case 3: batch smaller than one sublane tile (single ragged block).
    s3 = jax.random.normal(k3, (5, input_dim), jnp.float32)
    mu3, sg3 = run(s3)
    check(s3, mu3, sg3, "B=5")

    # TODO(synk): sample_normal (Normal rsample / tanh squashing / log_prob) is
    # stochastic policy sampling outside forward(); left out of the kernel.
    print("KERNEL_OK")
</pallas_src>

<mosaic_0001>
module attributes {stable_mosaic.version = 11 : i64} {
  func.func @_actor_kernel(%arg0: i32, %arg1: memref<8x8xf32, #tpu.memory_space<vmem>>, %arg2: memref<8x256xf32, #tpu.memory_space<vmem>>, %arg3: memref<1x256xf32, #tpu.memory_space<vmem>>, %arg4: memref<256x256xf32, #tpu.memory_space<vmem>>, %arg5: memref<1x256xf32, #tpu.memory_space<vmem>>, %arg6: memref<256x128xf32, #tpu.memory_space<vmem>>, %arg7: memref<1x128xf32, #tpu.memory_space<vmem>>, %arg8: memref<8x2xf32, #tpu.memory_space<vmem>>, %arg9: memref<8x2xf32, #tpu.memory_space<vmem>>) attributes {dimension_semantics = [#tpu.dimension_semantics<parallel>], iteration_bounds = array<i64: 1>, scalar_prefetch = 0 : i64, scratch_operands = 0 : i64, tpu.core_type = #tpu.core_type<tc>, window_params = [{transform_indices = @transform_0, window_bounds = array<i64: 8, 8>}, {pipeline_mode = #tpu.pipeline_mode<synchronous>, transform_indices = @transform_1, window_bounds = array<i64: 8, 256>}, {pipeline_mode = #tpu.pipeline_mode<synchronous>, transform_indices = @transform_2, window_bounds = array<i64: 1, 256>}, {pipeline_mode = #tpu.pipeline_mode<synchronous>, transform_indices = @transform_3, window_bounds = array<i64: 256, 256>}, {pipeline_mode = #tpu.pipeline_mode<synchronous>, transform_indices = @transform_4, window_bounds = array<i64: 1, 256>}, {pipeline_mode = #tpu.pipeline_mode<synchronous>, transform_indices = @transform_5, window_bounds = array<i64: 256, 128>}, {pipeline_mode = #tpu.pipeline_mode<synchronous>, transform_indices = @transform_6, window_bounds = array<i64: 1, 128>}, {transform_indices = @transform_7, window_bounds = array<i64: 8, 2>}, {transform_indices = @transform_8, window_bounds = array<i64: 8, 2>}]} {
    %c0 = arith.constant 0 : index
    %c0_0 = arith.constant 0 : index
    %0 = vector.load %arg1[%c0, %c0_0] : memref<8x8xf32, #tpu.memory_space<vmem>>, vector<8x8xf32>
    %c0_1 = arith.constant 0 : index
    %c0_2 = arith.constant 0 : index
    %1 = vector.load %arg2[%c0_1, %c0_2] : memref<8x256xf32, #tpu.memory_space<vmem>>, vector<8x256xf32>
    %cst = arith.constant dense<0.000000e+00> : vector<8x256xf32>
    %2 = tpu.matmul %0, %1, %cst {dimension_numbers = #tpu.dot_dimension_numbers<[1], [0], [0], [1], [0, 0, 1, 1], [], []>} : vector<8x8xf32>, vector<8x256xf32>, vector<8x256xf32> -> vector<8x256xf32>
    %c0_3 = arith.constant 0 : index
    %c0_4 = arith.constant 0 : index
    %3 = vector.load %arg3[%c0_3, %c0_4] : memref<1x256xf32, #tpu.memory_space<vmem>>, vector<1x256xf32>
    %4 = vector.broadcast %3 : vector<1x256xf32> to vector<8x256xf32>
    %5 = arith.addf %2, %4 : vector<8x256xf32>
    %cst_5 = arith.constant 0.000000e+00 : f32
    %6 = vector.broadcast %cst_5 : f32 to vector<8x256xf32>
    %7 = arith.maximumf %5, %6 : vector<8x256xf32>
    %c0_6 = arith.constant 0 : index
    %c0_7 = arith.constant 0 : index
    %8 = vector.load %arg4[%c0_6, %c0_7] : memref<256x256xf32, #tpu.memory_space<vmem>>, vector<256x256xf32>
    %cst_8 = arith.constant dense<0.000000e+00> : vector<8x256xf32>
    %9 = tpu.matmul %7, %8, %cst_8 {dimension_numbers = #tpu.dot_dimension_numbers<[1], [0], [0], [1], [0, 0, 1, 1], [], []>} : vector<8x256xf32>, vector<256x256xf32>, vector<8x256xf32> -> vector<8x256xf32>
    %c0_9 = arith.constant 0 : index
    %c0_10 = arith.constant 0 : index
    %10 = vector.load %arg5[%c0_9, %c0_10] : memref<1x256xf32, #tpu.memory_space<vmem>>, vector<1x256xf32>
    %11 = vector.broadcast %10 : vector<1x256xf32> to vector<8x256xf32>
    %12 = arith.addf %9, %11 : vector<8x256xf32>
    %cst_11 = arith.constant 0.000000e+00 : f32
    %13 = vector.broadcast %cst_11 : f32 to vector<8x256xf32>
    %14 = arith.maximumf %12, %13 : vector<8x256xf32>
    %c0_12 = arith.constant 0 : index
    %c0_13 = arith.constant 0 : index
    %15 = vector.load %arg6[%c0_12, %c0_13] : memref<256x128xf32, #tpu.memory_space<vmem>>, vector<256x128xf32>
    %cst_14 = arith.constant dense<0.000000e+00> : vector<8x128xf32>
    %16 = tpu.matmul %14, %15, %cst_14 {dimension_numbers = #tpu.dot_dimension_numbers<[1], [0], [0], [1], [0, 0, 1, 1], [], []>} : vector<8x256xf32>, vector<256x128xf32>, vector<8x128xf32> -> vector<8x128xf32>
    %c0_15 = arith.constant 0 : index
    %c0_16 = arith.constant 0 : index
    %17 = vector.load %arg7[%c0_15, %c0_16] : memref<1x128xf32, #tpu.memory_space<vmem>>, vector<1x128xf32>
    %18 = vector.broadcast %17 : vector<1x128xf32> to vector<8x128xf32>
    %19 = arith.addf %16, %18 : vector<8x128xf32>
    %20 = vector.extract_strided_slice %19 {offsets = [0, 0], sizes = [8, 2], strides = [1, 1]} : vector<8x128xf32> to vector<8x2xf32>
    %c0_17 = arith.constant 0 : index
    %c0_18 = arith.constant 0 : index
    %21 = vector.load %arg8[%c0_17, %c0_18] : memref<8x2xf32, #tpu.memory_space<vmem>>, vector<8x2xf32>
    tpu.vector_store %arg8[%c0_17, %c0_18], %20 {strides = array<i32>} : memref<8x2xf32, #tpu.memory_space<vmem>>, vector<8x2xf32>,
    %22 = vector.extract_strided_slice %19 {offsets = [0, 2], sizes = [8, 2], strides = [1, 1]} : vector<8x128xf32> to vector<8x2xf32>
    %cst_19 = arith.constant 9.99999997E-7 : f32
    %cst_20 = arith.constant 1.000000e+00 : f32
    %23 = vector.broadcast %cst_19 : f32 to vector<8x2xf32>
    %24 = arith.maximumf %23, %22 : vector<8x2xf32>
    %25 = vector.broadcast %cst_20 : f32 to vector<8x2xf32>
    %26 = arith.minimumf %25, %24 : vector<8x2xf32>
    %c0_21 = arith.constant 0 : index
    %c0_22 = arith.constant 0 : index
    %27 = vector.load %arg9[%c0_21, %c0_22] : memref<8x2xf32, #tpu.memory_space<vmem>>, vector<8x2xf32>
    tpu.vector_store %arg9[%c0_21, %c0_22], %26 {strides = array<i32>} : memref<8x2xf32, #tpu.memory_space<vmem>>, vector<8x2xf32>,
    return
  }
  func.func @transform_0(%arg0: i32) -> (i32, i32) {
    %c0_i32 = arith.constant 0 : i32
    %c0_i32_0 = arith.constant 0 : i32
    return %arg0, %c0_i32 : i32, i32
  }
  func.func @transform_1(%arg0: i32) -> (i32, i32) {
    %c0_i32 = arith.constant 0 : i32
    %c0_i32_0 = arith.constant 0 : i32
    %c0_i32_1 = arith.constant 0 : i32
    return %c0_i32, %c0_i32_0 : i32, i32
  }
  func.func @transform_2(%arg0: i32) -> (i32, i32) {
    %c0_i32 = arith.constant 0 : i32
    %c0_i32_0 = arith.constant 0 : i32
    %c0_i32_1 = arith.constant 0 : i32
    return %c0_i32, %c0_i32_0 : i32, i32
  }
  func.func @transform_3(%arg0: i32) -> (i32, i32) {
    %c0_i32 = arith.constant 0 : i32
    %c0_i32_0 = arith.constant 0 : i32
    %c0_i32_1 = arith.constant 0 : i32
    return %c0_i32, %c0_i32_0 : i32, i32
  }
  func.func @transform_4(%arg0: i32) -> (i32, i32) {
    %c0_i32 = arith.constant 0 : i32
    %c0_i32_0 = arith.constant 0 : i32
    %c0_i32_1 = arith.constant 0 : i32
    return %c0_i32, %c0_i32_0 : i32, i32
  }
  func.func @transform_5(%arg0: i32) -> (i32, i32) {
    %c0_i32 = arith.constant 0 : i32
    %c0_i32_0 = arith.constant 0 : i32
    %c0_i32_1 = arith.constant 0 : i32
    return %c0_i32, %c0_i32_0 : i32, i32
  }
  func.func @transform_6(%arg0: i32) -> (i32, i32) {
    %c0_i32 = arith.constant 0 : i32
    %c0_i32_0 = arith.constant 0 : i32
    %c0_i32_1 = arith.constant 0 : i32
    return %c0_i32, %c0_i32_0 : i32, i32
  }
  func.func @transform_7(%arg0: i32) -> (i32, i32) {
    %c0_i32 = arith.constant 0 : i32
    %c0_i32_0 = arith.constant 0 : i32
    return %arg0, %c0_i32 : i32, i32
  }
  func.func @transform_8(%arg0: i32) -> (i32, i32) {
    %c0_i32 = arith.constant 0 : i32
    %c0_i32_0 = arith.constant 0 : i32
    return %arg0, %c0_i32 : i32, i32
  }
}

</mosaic_0001>

<llo_original>
// kernel: actor_forward.1
$region0: #{actor_forward.1}
  #allocation0 [shape = 'u32[]', space=smem, size = 0x4, offset = 0x4, fixed_abs, tag = 'smem constant byte address 0x4 - core index']
  #allocation1 [shape = 'u32[144,128]{1,0:T(1,128)}', space=vmem, size = 0x12000, scoped, tag = 'internal scratch']
  %s0 = inlined_call_operand.hbm [shape: f32[8,8], index: 0, kind: input, shape index: {}]
  %s1 = inlined_call_operand.hbm [shape: f32[8,256], index: 1, kind: input, shape index: {}]
  %s2 = inlined_call_operand.vmem [shape: f32[1,256], index: 2, kind: input, shape index: {}]
  %s3 = inlined_call_operand.hbm [shape: f32[256,256], index: 3, kind: input, shape index: {}]
  %s4 = inlined_call_operand.vmem [shape: f32[1,256], index: 4, kind: input, shape index: {}]
  %s5 = inlined_call_operand.hbm [shape: f32[256,128], index: 5, kind: input, shape index: {}]
  %s6 = inlined_call_operand.vmem [shape: f32[1,128], index: 6, kind: input, shape index: {}]
  %s7 = inlined_call_operand.vmem [shape: f32[8,2], index: 7, kind: output, shape index: {0}]
  %s8 = inlined_call_operand.vmem [shape: f32[8,2], index: 8, kind: output, shape index: {1}]
  %9 = xla_tuple %s7, %s8
  %s10 = sld [smem:[#allocation0]]
  $region62: #{actor_forward.1} parent=0
    _
  %s12 = ssub.s32 1, %s10
  %s13 = scalar_select 0, %s12, %s10
  $region1: #{actor_forward.1} parent=0
    #allocation2 [shape = 'u8[4096]{0}', space=vmem, size = 0x1000, scoped, tag = 'input window, operand 0, single buffered']
    #allocation3 [shape = 's32[1]{0}', space=sflag, size = 0x4, scoped, tag = 'scoped memory for actor_forward.1']
    #allocation4 [shape = 'u8[8192]{0}', space=vmem, size = 0x2000, scoped, tag = 'input window, operand 1, single buffered']
    #allocation5 [shape = 's32[1]{0}', space=sflag, size = 0x4, scoped, tag = 'scoped memory for actor_forward.1']
    #allocation6 [shape = 'u8[262144]{0}', space=vmem, size = 0x40000, scoped, tag = 'input window, operand 3, single buffered']
    #allocation7 [shape = 'u8[131072]{0}', space=vmem, size = 0x20000, scoped, tag = 'input window, operand 5, single buffered']
    #allocation8 [shape = 's32[1]{0}', space=sflag, size = 0x4, scoped, tag = 'scoped memory for actor_forward.1']
    %14 = vsyncpa [#allocation3], 0
    %15 = vsyncpa [#allocation5], 0
    %16 = vsyncpa [#allocation8], 0
    // Predicated region
    $region2: #{actor_forward.1} parent=1 // pred_check
      _
    $region3: #{actor_forward.1} parent=1 // pred_check_branch
      %18 = sbr.rel (0) target = $region5
    $region4: #{actor_forward.1} parent=1 // pred_region
      %s20 = ssub.s32 128, 128
      %21 = vsyncadd [#allocation3], %s20
      %s23 = sshll.u32 [#allocation2], 4
      %s24 = int_to_ptr.vmem [resolvable:$true] %s23
      %26 = dma.hbm_to_vmem [thread:$0]  %s0, 128, %s24, [#allocation3]
    $region5: #{actor_forward.1} parent=1 // pred_fallthru
      _
    // Predicated region
    $region6: #{actor_forward.1} parent=1 // pred_check
      _
    $region7: #{actor_forward.1} parent=1 // pred_check_branch
      %28 = sbr.rel (0) target = $region9
    $region8: #{actor_forward.1} parent=1 // pred_region
      %s30 = ssub.s32 256, 256
      %31 = vsyncadd [#allocation5], %s30
      %s33 = sshll.u32 [#allocation4], 4
      %s34 = int_to_ptr.vmem [resolvable:$true] %s33
      %36 = dma.hbm_to_vmem [thread:$0]  %s1, 256, %s34, [#allocation5]
    $region9: #{actor_forward.1} parent=1 // pred_fallthru
      _
    // Predicated region
    $region10: #{actor_forward.1} parent=1 // pred_check
      _
    $region11: #{actor_forward.1} parent=1 // pred_check_branch
      %38 = sbr.rel (0) target = $region13
    $region12: #{actor_forward.1} parent=1 // pred_region
      _
    $region13: #{actor_forward.1} parent=1 // pred_fallthru
      _
    // Predicated region
    $region14: #{actor_forward.1} parent=1 // pred_check
      _
    $region15: #{actor_forward.1} parent=1 // pred_check_branch
      %40 = sbr.rel (0) target = $region17
    $region16: #{actor_forward.1} parent=1 // pred_region
      %s42 = ssub.s32 8192, 8192
      %43 = vsyncadd [#allocation5], %s42
      %s44 = sshll.u32 [#allocation6], 4
      %s45 = int_to_ptr.vmem [resolvable:$true] %s44
      %50 = dma.hbm_to_vmem [thread:$0]  %s3, 8192, %s45, [#allocation5], 256, 256, 16
    $region17: #{actor_forward.1} parent=1 // pred_fallthru
      _
    // Predicated region
    $region18: #{actor_forward.1} parent=1 // pred_check
      _
    $region19: #{actor_forward.1} parent=1 // pred_check_branch
      %52 = sbr.rel (0) target = $region21
    $region20: #{actor_forward.1} parent=1 // pred_region
      _
    $region21: #{actor_forward.1} parent=1 // pred_fallthru
      _
    // Predicated region
    $region22: #{actor_forward.1} parent=1 // pred_check
      _
    $region23: #{actor_forward.1} parent=1 // pred_check_branch
      %54 = sbr.rel (0) target = $region25
    $region24: #{actor_forward.1} parent=1 // pred_region
      %s56 = ssub.s32 4096, 4096
      %57 = vsyncadd [#allocation8], %s56
      %s58 = sshll.u32 [#allocation7], 4
      %s59 = int_to_ptr.vmem [resolvable:$true] %s58
      %64 = dma.hbm_to_vmem [thread:$0]  %s5, 4096, %s59, [#allocation8], 128, 128, 8
    $region25: #{actor_forward.1} parent=1 // pred_fallthru
      _
    // Predicated region
    $region26: #{actor_forward.1} parent=1 // pred_check
      _
    $region27: #{actor_forward.1} parent=1 // pred_check_branch
      %66 = sbr.rel (0) target = $region29
    $region28: #{actor_forward.1} parent=1 // pred_region
      _
    $region29: #{actor_forward.1} parent=1 // pred_fallthru
      _
    // Predicated region
    $region30: #{actor_forward.1} parent=1 // pred_check
      _
    $region31: #{actor_forward.1} parent=1 // pred_check_branch
      %68 = sbr.rel (0) target = $region33
    $region32: #{actor_forward.1} parent=1 // pred_region
      %69 = dma.done [#allocation3], 128
    $region33: #{actor_forward.1} parent=1 // pred_fallthru
      _
    // Predicated region
    $region34: #{actor_forward.1} parent=1 // pred_check
      _
    $region35: #{actor_forward.1} parent=1 // pred_check_branch
      %71 = sbr.rel (0) target = $region37
    $region36: #{actor_forward.1} parent=1 // pred_region
      %72 = dma.done [#allocation5], 256
    $region37: #{actor_forward.1} parent=1 // pred_fallthru
      _
    // Predicated region
    $region38: #{actor_forward.1} parent=1 // pred_check
      _
    $region39: #{actor_forward.1} parent=1 // pred_check_branch
      %74 = sbr.rel (0) target = $region41
    $region40: #{actor_forward.1} parent=1 // pred_region
      %75 = dma.done [#allocation5], 8192
    $region41: #{actor_forward.1} parent=1 // pred_fallthru
      _
    // Predicated region
    $region42: #{actor_forward.1} parent=1 // pred_check
      _
    $region43: #{actor_forward.1} parent=1 // pred_check_branch
      %77 = sbr.rel (0) target = $region45
    $region44: #{actor_forward.1} parent=1 // pred_region
      %78 = dma.done [#allocation8], 4096
    $region45: #{actor_forward.1} parent=1 // pred_fallthru
      _
    %v79 = vld [vmem:[#allocation2] sm:$0xff]
    %v80 = vld [vmem:[#allocation4] sm:$0xff]
    %v81 = vld [vmem:[#allocation4 + $0x8] sm:$0xff]
    %v82 = vld [vmem:[%s2] sm:$0x3]
    %v84 = vlaneseq
    %v85 = vshrl.u32 %v84, 7
    %v86 = vsub.s32 0, %v85
    %v87 = vrot.slane %v82, %v86
    %v88 = vlaneseq
    %v89 = vshrl.u32 %v88, 7
    %v90 = vsub.s32 1, %v89
    %v91 = vrot.slane %v82, %v90
    %vm94 = vcmask 64512
    %v96 = vsel %vm94, %v79, 0
    %98 = vmatprep.subr.mxu0 %v81
    %99 = vmatpush1.msra.mxu0 %v80
    %100 = vmatprep.subr.mxu0 0.0
    %101 = vmatpush1.msra.mxu0 0.0
    %102 = vmatprep.subr.mxu0 0.0
    %103 = vmatpush1.msra.mxu0 0.0
    %104 = vmatprep.subr.mxu0 0.0
    %105 = vmatpush1.msra.mxu0 0.0
    %106 = vmatprep.subr.mxu0 0.0
    %107 = vmatpush1.msra.mxu0 0.0
    %108 = vmatprep.subr.mxu0 0.0
    %109 = vmatpush1.msra.mxu0 0.0
    %110 = vmatprep.subr.mxu0 0.0
    %111 = vmatpush1.msra.mxu0 0.0
    %112 = vmatprep.subr.mxu0 0.0
    %113 = vmatpush1.msra.mxu0 0.0
    %114 = vmatprep.subr.mxu0 0.0
    %115 = vmatpush1.msra.mxu0 0.0
    %116 = vmatprep.subr.mxu0 0.0
    %117 = vmatpush1.msra.mxu0 0.0
    %118 = vmatprep.subr.mxu0 0.0
    %119 = vmatpush1.msra.mxu0 0.0
    %120 = vmatprep.subr.mxu0 0.0
    %121 = vmatpush1.msra.mxu0 0.0
    %122 = vmatprep.subr.mxu0 0.0
    %123 = vmatpush1.msra.mxu0 0.0
    %124 = vmatprep.subr.mxu0 0.0
    %125 = vmatpush1.msra.mxu0 0.0
    %126 = vmatprep.subr.mxu0 0.0
    %127 = vmatpush1.msra.mxu0 0.0
    %128 = vmatprep.subr.mxu0 0.0
    %129 = vmatpush1.msra.mxu0 0.0
    %130 = vmatprep.subr.mxu0 0.0
    %131 = vmatpush1.msra.mxu0 0.0
    %132 = vmatprep.subr.mxu0 0.0
    %133 = vmatpush1.msra.mxu0 0.0
    %134 = vmatprep.subr.mxu0 0.0
    %135 = vmatpush1.msra.mxu0 0.0
    %136 = vmatprep.subr.mxu0 0.0
    %137 = vmatpush1.msra.mxu0 0.0
    %138 = vmatprep.subr.mxu0 0.0
    %139 = vmatpush1.msra.mxu0 0.0
    %140 = vmatprep.subr.mxu0 0.0
    %141 = vmatpush1.msra.mxu0 0.0
    %142 = vmatprep.subr.mxu0 0.0
    %143 = vmatpush1.msra.mxu0 0.0
    %144 = vmatprep.subr.mxu0 0.0
    %145 = vmatpush1.msra.mxu0 0.0
    %146 = vmatprep.subr.mxu0 0.0
    %147 = vmatpush1.msra.mxu0 0.0
    %148 = vmatprep.subr.mxu0 0.0
    %149 = vmatpush1.msra.mxu0 0.0
    %150 = vmatprep.subr.mxu0 0.0
    %151 = vmatpush1.msra.mxu0 0.0
    %152 = vmatprep.subr.mxu0 0.0
    %153 = vmatpush1.msra.mxu0 0.0
    %154 = vmatprep.subr.mxu0 0.0
    %155 = vmatpush1.msra.mxu0 0.0
    %156 = vmatprep.subr.mxu0 0.0
    %157 = vmatpush1.msra.mxu0 0.0
    %158 = vmatprep.subr.mxu0 0.0
    %159 = vmatpush1.msra.mxu0 0.0
    %160 = vmatprep.subr.mxu0 0.0
    %161 = vmatpush1.msra.mxu0 0.0
    %162 = vmatprep.mubr.f32.mxu0 0.0
    %163 = vmatmul.mubr.f32.gmra.mrb[0].mxu0 %v96
    %v164 = vpop.f32.mrb[0].mxu0
    %v165 = vadd.f32 %v87, %v164
    %v166 = vpop.f32.mrb[0].mxu0
    %v167 = vadd.f32 %v91, %v166
    %168 = vdwg.mxu0
    %v169 = vmax.f32 %v165, 0.0
    %v170 = vmax.f32 %v167, 0.0
    %v171 = vld [vmem:[#allocation6] sm:$0xff]
    %v172 = vld [vmem:[#allocation6 + $0x8] sm:$0xff]
    %v173 = vld [vmem:[#allocation6 + $0x10] sm:$0xff]
    %v174 = vld [vmem:[#allocation6 + $0x18] sm:$0xff]
    %v175 = vld [vmem:[#allocation6 + $0x20] sm:$0xff]
    %v176 = vld [vmem:[#allocation6 + $0x28] sm:$0xff]
    %v177 = vld [vmem:[#allocation6 + $0x30] sm:$0xff]
    %v178 = vld [vmem:[#allocation6 + $0x38] sm:$0xff]
    %v179 = vld [vmem:[#allocation6 + $0x40] sm:$0xff]
    %v180 = vld [vmem:[#allocation6 + $0x48] sm:$0xff]
    %v181 = vld [vmem:[#allocation6 + $0x50] sm:$0xff]
    %v182 = vld [vmem:[#allocation6 + $0x58] sm:$0xff]
    %v183 = vld [vmem:[#allocation6 + $0x60] sm:$0xff]
    %v184 = vld [vmem:[#allocation6 + $0x68] sm:$0xff]
    %v185 = vld [vmem:[#allocation6 + $0x70] sm:$0xff]
    %v186 = vld [vmem:[#allocation6 + $0x78] sm:$0xff]
    %v187 = vld [vmem:[#allocation6 + $0x80] sm:$0xff]
    %v188 = vld [vmem:[#allocation6 + $0x88] sm:$0xff]
    %v189 = vld [vmem:[#allocation6 + $0x90] sm:$0xff]
    %v190 = vld [vmem:[#allocation6 + $0x98] sm:$0xff]
    %v191 = vld [vmem:[#allocation6 + $0xa0] sm:$0xff]
    %v192 = vld [vmem:[#allocation6 + $0xa8] sm:$0xff]
    %v193 = vld [vmem:[#allocation6 + $0xb0] sm:$0xff]
    %v194 = vld [vmem:[#allocation6 + $0xb8] sm:$0xff]
    %v195 = vld [vmem:[#allocation6 + $0xc0] sm:$0xff]
    %v196 = vld [vmem:[#allocation6 + $0xc8] sm:$0xff]
    %v197 = vld [vmem:[#allocation6 + $0xd0] sm:$0xff]
    %v198 = vld [vmem:[#allocation6 + $0xd8] sm:$0xff]
    %v199 = vld [vmem:[#allocation6 + $0xe0] sm:$0xff]
    %v200 = vld [vmem:[#allocation6 + $0xe8] sm:$0xff]
    %v201 = vld [vmem:[#allocation6 + $0xf0] sm:$0xff]
    %v202 = vld [vmem:[#allocation6 + $0xf8] sm:$0xff]
    %v203 = vld [vmem:[#allocation6 + $0x100] sm:$0xff]
    %v204 = vld [vmem:[#allocation6 + $0x108] sm:$0xff]
    %v205 = vld [vmem:[#allocation6 + $0x110] sm:$0xff]
    %v206 = vld [vmem:[#allocation6 + $0x118] sm:$0xff]
    %v207 = vld [vmem:[#allocation6 + $0x120] sm:$0xff]
    %v208 = vld [vmem:[#allocation6 + $0x128] sm:$0xff]
    %v209 = vld [vmem:[#allocation6 + $0x130] sm:$0xff]
    %v210 = vld [vmem:[#allocation6 + $0x138] sm:$0xff]
    %v211 = vld [vmem:[#allocation6 + $0x140] sm:$0xff]
    %v212 = vld [vmem:[#allocation6 + $0x148] sm:$0xff]
    %v213 = vld [vmem:[#allocation6 + $0x150] sm:$0xff]
    %v214 = vld [vmem:[#allocation6 + $0x158] sm:$0xff]
    %v215 = vld [vmem:[#allocation6 + $0x160] sm:$0xff]
    %v216 = vld [vmem:[#allocation6 + $0x168] sm:$0xff]
    %v217 = vld [vmem:[#allocation6 + $0x170] sm:$0xff]
    %v218 = vld [vmem:[#allocation6 + $0x178] sm:$0xff]
    %v219 = vld [vmem:[#allocation6 + $0x180] sm:$0xff]
    %v220 = vld [vmem:[#allocation6 + $0x188] sm:$0xff]
    %v221 = vld [vmem:[#allocation6 + $0x190] sm:$0xff]
    %v222 = vld [vmem:[#allocation6 + $0x198] sm:$0xff]
    %v223 = vld [vmem:[#allocation6 + $0x1a0] sm:$0xff]
    %v224 = vld [vmem:[#allocation6 + $0x1a8] sm:$0xff]
    %v225 = vld [vmem:[#allocation6 + $0x1b0] sm:$0xff]
    %v226 = vld [vmem:[#allocation6 + $0x1b8] sm:$0xff]
    %v227 = vld [vmem:[#allocation6 + $0x1c0] sm:$0xff]
    %v228 = vld [vmem:[#allocation6 + $0x1c8] sm:$0xff]
    %v229 = vld [vmem:[#allocation6 + $0x1d0] sm:$0xff]
    %v230 = vld [vmem:[#allocation6 + $0x1d8] sm:$0xff]
    %v231 = vld [vmem:[#allocation6 + $0x1e0] sm:$0xff]
    %v232 = vld [vmem:[#allocation6 + $0x1e8] sm:$0xff]
    %v233 = vld [vmem:[#allocation6 + $0x1f0] sm:$0xff]
    %v234 = vld [vmem:[#allocation6 + $0x1f8] sm:$0xff]
    %v235 = vld [vmem:[%s4] sm:$0x3]
    %v237 = vlaneseq
    %v238 = vshrl.u32 %v237, 7
    %v239 = vsub.s32 0, %v238
    %v240 = vrot.slane %v235, %v239
    %v241 = vlaneseq
    %v242 = vshrl.u32 %v241, 7
    %v243 = vsub.s32 1, %v242
    %v244 = vrot.slane %v235, %v243
    %247 = vmatprep.subr.mxu0 %v172
    %248 = vmatpush1.msra.mxu0 %v171
    %249 = vmatprep.subr.mxu0 %v174
    %250 = vmatpush1.msra.mxu0 %v173
    %251 = vmatprep.subr.mxu0 %v176
    %252 = vmatpush1.msra.mxu0 %v175
    %253 = vmatprep.subr.mxu0 %v178
    %254 = vmatpush1.msra.mxu0 %v177
    %255 = vmatprep.subr.mxu0 %v180
    %256 = vmatpush1.msra.mxu0 %v179
    %257 = vmatprep.subr.mxu0 %v182
    %258 = vmatpush1.msra.mxu0 %v181
    %259 = vmatprep.subr.mxu0 %v184
    %260 = vmatpush1.msra.mxu0 %v183
    %261 = vmatprep.subr.mxu0 %v186
    %262 = vmatpush1.msra.mxu0 %v185
    %263 = vmatprep.subr.mxu0 %v188
    %264 = vmatpush1.msra.mxu0 %v187
    %265 = vmatprep.subr.mxu0 %v190
    %266 = vmatpush1.msra.mxu0 %v189
    %267 = vmatprep.subr.mxu0 %v192
    %268 = vmatpush1.msra.mxu0 %v191
    %269 = vmatprep.subr.mxu0 %v194
    %270 = vmatpush1.msra.mxu0 %v193
    %271 = vmatprep.subr.mxu0 %v196
    %272 = vmatpush1.msra.mxu0 %v195
    %273 = vmatprep.subr.mxu0 %v198
    %274 = vmatpush1.msra.mxu0 %v197
    %275 = vmatprep.subr.mxu0 %v200
    %276 = vmatpush1.msra.mxu0 %v199
    %277 = vmatprep.subr.mxu0 %v202
    %278 = vmatpush1.msra.mxu0 %v201
    %279 = vmatprep.subr.mxu0 %v204
    %280 = vmatpush1.msra.mxu0 %v203
    %281 = vmatprep.subr.mxu0 %v206
    %282 = vmatpush1.msra.mxu0 %v205
    %283 = vmatprep.subr.mxu0 %v208
    %284 = vmatpush1.msra.mxu0 %v207
    %285 = vmatprep.subr.mxu0 %v210
    %286 = vmatpush1.msra.mxu0 %v209
    %287 = vmatprep.subr.mxu0 %v212
    %288 = vmatpush1.msra.mxu0 %v211
    %289 = vmatprep.subr.mxu0 %v214
    %290 = vmatpush1.msra.mxu0 %v213
    %291 = vmatprep.subr.mxu0 %v216
    %292 = vmatpush1.msra.mxu0 %v215
    %293 = vmatprep.subr.mxu0 %v218
    %294 = vmatpush1.msra.mxu0 %v217
    %295 = vmatprep.subr.mxu0 %v220
    %296 = vmatpush1.msra.mxu0 %v219
    %297 = vmatprep.subr.mxu0 %v222
    %298 = vmatpush1.msra.mxu0 %v221
    %299 = vmatprep.subr.mxu0 %v224
    %300 = vmatpush1.msra.mxu0 %v223
    %301 = vmatprep.subr.mxu0 %v226
    %302 = vmatpush1.msra.mxu0 %v225
    %303 = vmatprep.subr.mxu0 %v228
    %304 = vmatpush1.msra.mxu0 %v227
    %305 = vmatprep.subr.mxu0 %v230
    %306 = vmatpush1.msra.mxu0 %v229
    %307 = vmatprep.subr.mxu0 %v232
    %308 = vmatpush1.msra.mxu0 %v231
    %309 = vmatprep.subr.mxu0 %v234
    %310 = vmatpush1.msra.mxu0 %v233
    %311 = vmatprep.mubr.f32.mxu0 %v170
    %312 = vmatmul.mubr.f32.gmra.mrb[0].mxu0 %v169
    %v313 = vpop.f32.mrb[0].mxu0
    %v314 = vadd.f32 %v240, %v313
    %v315 = vpop.f32.mrb[0].mxu0
    %v316 = vadd.f32 %v244, %v315
    %317 = vdwg.mxu0
    %v318 = vmax.f32 %v314, 0.0
    %v319 = vmax.f32 %v316, 0.0
    %v320 = vld [vmem:[#allocation7] sm:$0xff]
    %v321 = vld [vmem:[#allocation7 + $0x8] sm:$0xff]
    %v322 = vld [vmem:[#allocation7 + $0x10] sm:$0xff]
    %v323 = vld [vmem:[#allocation7 + $0x18] sm:$0xff]
    %v324 = vld [vmem:[#allocation7 + $0x20] sm:$0xff]
    %v325 = vld [vmem:[#allocation7 + $0x28] sm:$0xff]
    %v326 = vld [vmem:[#allocation7 + $0x30] sm:$0xff]
    %v327 = vld [vmem:[#allocation7 + $0x38] sm:$0xff]
    %v328 = vld [vmem:[#allocation7 + $0x40] sm:$0xff]
    %v329 = vld [vmem:[#allocation7 + $0x48] sm:$0xff]
    %v330 = vld [vmem:[#allocation7 + $0x50] sm:$0xff]
    %v331 = vld [vmem:[#allocation7 + $0x58] sm:$0xff]
    %v332 = vld [vmem:[#allocation7 + $0x60] sm:$0xff]
    %v333 = vld [vmem:[#allocation7 + $0x68] sm:$0xff]
    %v334 = vld [vmem:[#allocation7 + $0x70] sm:$0xff]
    %v335 = vld [vmem:[#allocation7 + $0x78] sm:$0xff]
    %v336 = vld [vmem:[#allocation7 + $0x80] sm:$0xff]
    %v337 = vld [vmem:[#allocation7 + $0x88] sm:$0xff]
    %v338 = vld [vmem:[#allocation7 + $0x90] sm:$0xff]
    %v339 = vld [vmem:[#allocation7 + $0x98] sm:$0xff]
    %v340 = vld [vmem:[#allocation7 + $0xa0] sm:$0xff]
    %v341 = vld [vmem:[#allocation7 + $0xa8] sm:$0xff]
    %v342 = vld [vmem:[#allocation7 + $0xb0] sm:$0xff]
    %v343 = vld [vmem:[#allocation7 + $0xb8] sm:$0xff]
    %v344 = vld [vmem:[#allocation7 + $0xc0] sm:$0xff]
    %v345 = vld [vmem:[#allocation7 + $0xc8] sm:$0xff]
    %v346 = vld [vmem:[#allocation7 + $0xd0] sm:$0xff]
    %v347 = vld [vmem:[#allocation7 + $0xd8] sm:$0xff]
    %v348 = vld [vmem:[#allocation7 + $0xe0] sm:$0xff]
    %v349 = vld [vmem:[#allocation7 + $0xe8] sm:$0xff]
    %v350 = vld [vmem:[#allocation7 + $0xf0] sm:$0xff]
    %v351 = vld [vmem:[#allocation7 + $0xf8] sm:$0xff]
    %v352 = vld [vmem:[%s6] sm:$0x1]
    %v354 = vlaneseq
    %v355 = vshrl.u32 %v354, 7
    %v356 = vsub.s32 0, %v355
    %v357 = vrot.slane %v352, %v356
    %359 = vmatprep.subr.mxu0 0.0
    %360 = vmatpush1.msra.mxu0 %v320
    %361 = vmatprep.subr.mxu0 0.0
    %362 = vmatpush1.msra.mxu0 %v321
    %363 = vmatprep.subr.mxu0 0.0
    %364 = vmatpush1.msra.mxu0 %v322
    %365 = vmatprep.subr.mxu0 0.0
    %366 = vmatpush1.msra.mxu0 %v323
    %367 = vmatprep.subr.mxu0 0.0
    %368 = vmatpush1.msra.mxu0 %v324
    %369 = vmatprep.subr.mxu0 0.0
    %370 = vmatpush1.msra.mxu0 %v325
    %371 = vmatprep.subr.mxu0 0.0
    %372 = vmatpush1.msra.mxu0 %v326
    %373 = vmatprep.subr.mxu0 0.0
    %374 = vmatpush1.msra.mxu0 %v327
    %375 = vmatprep.subr.mxu0 0.0
    %376 = vmatpush1.msra.mxu0 %v328
    %377 = vmatprep.subr.mxu0 0.0
    %378 = vmatpush1.msra.mxu0 %v329
    %379 = vmatprep.subr.mxu0 0.0
    %380 = vmatpush1.msra.mxu0 %v330
    %381 = vmatprep.subr.mxu0 0.0
    %382 = vmatpush1.msra.mxu0 %v331
    %383 = vmatprep.subr.mxu0 0.0
    %384 = vmatpush1.msra.mxu0 %v332
    %385 = vmatprep.subr.mxu0 0.0
    %386 = vmatpush1.msra.mxu0 %v333
    %387 = vmatprep.subr.mxu0 0.0
    %388 = vmatpush1.msra.mxu0 %v334
    %389 = vmatprep.subr.mxu0 0.0
    %390 = vmatpush1.msra.mxu0 %v335
    %391 = vmatprep.subr.mxu0 0.0
    %392 = vmatpush1.msra.mxu0 %v336
    %393 = vmatprep.subr.mxu0 0.0
    %394 = vmatpush1.msra.mxu0 %v337
    %395 = vmatprep.subr.mxu0 0.0
    %396 = vmatpush1.msra.mxu0 %v338
    %397 = vmatprep.subr.mxu0 0.0
    %398 = vmatpush1.msra.mxu0 %v339
    %399 = vmatprep.subr.mxu0 0.0
    %400 = vmatpush1.msra.mxu0 %v340
    %401 = vmatprep.subr.mxu0 0.0
    %402 = vmatpush1.msra.mxu0 %v341
    %403 = vmatprep.subr.mxu0 0.0
    %404 = vmatpush1.msra.mxu0 %v342
    %405 = vmatprep.subr.mxu0 0.0
    %406 = vmatpush1.msra.mxu0 %v343
    %407 = vmatprep.subr.mxu0 0.0
    %408 = vmatpush1.msra.mxu0 %v344
    %409 = vmatprep.subr.mxu0 0.0
    %410 = vmatpush1.msra.mxu0 %v345
    %411 = vmatprep.subr.mxu0 0.0
    %412 = vmatpush1.msra.mxu0 %v346
    %413 = vmatprep.subr.mxu0 0.0
    %414 = vmatpush1.msra.mxu0 %v347
    %415 = vmatprep.subr.mxu0 0.0
    %416 = vmatpush1.msra.mxu0 %v348
    %417 = vmatprep.subr.mxu0 0.0
    %418 = vmatpush1.msra.mxu0 %v349
    %419 = vmatprep.subr.mxu0 0.0
    %420 = vmatpush1.msra.mxu0 %v350
    %421 = vmatprep.subr.mxu0 0.0
    %422 = vmatpush1.msra.mxu0 %v351
    %423 = vmatprep.mubr.f32.mxu0 %v319
    %424 = vmatmul.mubr.f32.gmra.mrb[0].mxu0 %v318
    %v425 = vpop.f32.mrb[0].mxu0
    %v426 = vadd.f32 %v357, %v425
    %v427 = vpop.f32.mrb[0].mxu0
    %428 = vdwg.mxu0
    %vm429 = vcmask 15360
    %430 = vst.msk [vmem:[%s7] sm:$0xff] %vm429, %v426
    %v431 = vmax.f32 %v426, 1e-06
    %v432 = vmin.f32 %v431, 1.0
    %434 = vrot.lane.b32.xlu0 %v432, 126
    %v435 = vpop.permute.xlu0 %434
    %437 = vst.msk [vmem:[%s8] sm:$0xff] %vm429, %v435
    // Predicated region
    $region46: #{actor_forward.1} parent=1 // pred_check
      _
    $region47: #{actor_forward.1} parent=1 // pred_check_branch
      %439 = sbr.rel (0) target = $region49
    $region48: #{actor_forward.1} parent=1 // pred_region
      _
    $region49: #{actor_forward.1} parent=1 // pred_fallthru
      _
    // Predicated region
    $region50: #{actor_forward.1} parent=1 // pred_check
      _
    $region51: #{actor_forward.1} parent=1 // pred_check_branch
      %441 = sbr.rel (0) target = $region53
    $region52: #{actor_forward.1} parent=1 // pred_region
      _
    $region53: #{actor_forward.1} parent=1 // pred_fallthru
      _
    // Predicated region
    $region54: #{actor_forward.1} parent=1 // pred_check
      _
    $region55: #{actor_forward.1} parent=1 // pred_check_branch
      %443 = sbr.rel (0) target = $region57
    $region56: #{actor_forward.1} parent=1 // pred_region
      _
    $region57: #{actor_forward.1} parent=1 // pred_fallthru
      _
    // Predicated region
    $region58: #{actor_forward.1} parent=1 // pred_check
      _
    $region59: #{actor_forward.1} parent=1 // pred_check_branch
      %445 = sbr.rel (0) target = $region61
    $region60: #{actor_forward.1} parent=1 // pred_region
      _
    $region61: #{actor_forward.1} parent=1 // pred_fallthru
      _
    %446 = vsyncpa [#allocation3], 1
    %447 = vsyncpa [#allocation5], 1
    %448 = vsyncpa [#allocation8], 1

</llo_original>
